<compile_context>
chip_gen: v7x
topology: tpu7x:2x2x1
jax: 0.10.0
libtpu: 0.0.40
codegen_flags: <defaults>
</compile_context>

<pallas_src>
import jax
import jax.numpy as jnp
from jax.experimental import pallas as pl
from jax.experimental.pallas import tpu as pltpu


def _round_up(x, m):
    return ((x + m - 1) // m) * m


def head_kernel(x_ref, w_ref, b_ref, o_ref):
    # x_ref: (TB, C, HW) — backbone NCHW layout with spatial flattened; HW sits on the lanes.
    # w_ref: (C, Npad) f32 with 1/(H*W) folded in; padded class columns are zero.
    # b_ref: (1, Npad) f32; padded class columns hold -1e30 so their softmax prob is exactly 0.
    # o_ref: (TB, Npad) f32.

    # F.avg_pool2d(x, kernel_size=H) -> global average pool. Lane reduce over HW with f32
    # accumulation (1/HW lives in the weights, so this is a pure sum).
    # Note: at large TB*C the pooled accumulator can pressure vregs; verify in the bundle
    # before chunking the reduction — the kernel is DMA-bound so mild spills are tolerable.
    pooled = jnp.sum(x_ref[...], axis=-1, dtype=jnp.float32)          # (TB, C) f32

    # nn.Dropout2d(p=0.8): identity in eval/inference mode.
    # TODO(synk): training-mode Dropout2d (random channel zeroing + 1/(1-p) scaling) not implemented.

    # last_linear_layer on the MXU. Padded columns: 0-weights + (-1e30) bias -> logits ~ -1e30.
    logits = jnp.dot(pooled, w_ref[...], preferred_element_type=jnp.float32) + b_ref[...]

    # nn.Softmax(dim=1). Padded columns underflow to exactly 0 and do not affect max/sum.
    # Exact divide keeps row sums at 1 to f32 rounding (approx reciprocal was only ~1e-3).
    m = jnp.max(logits, axis=-1, keepdims=True)
    e = jnp.exp(logits - m)
    o_ref[...] = (e / jnp.sum(e, axis=-1, keepdims=True)).astype(o_ref.dtype)


def _vmem_limit_bytes():
    """Generation-aware VMEM limit (conservative fallback if the chip can't be queried)."""
    try:
        cap = int(pltpu.get_tpu_info().vmem_capacity_bytes)
    except Exception:
        cap = 64 * 1024 * 1024                      # assume smallest (v7x-class) VMEM
    if cap >= 128 * 1024 * 1024:                    # v5e / v6e: 128 MiB physical VMEM
        return 100 * 1024 * 1024
    return 48 * 1024 * 1024                         # v7x: 64 MiB physical VMEM


def inception_resnet_head(x_nchw, weight, bias):
    """Classification head: global avg-pool -> Dropout2d(eval) -> Linear -> Softmax(dim=1).

    x_nchw: (B, C, H, W) backbone feature map (any float dtype; emit bf16 for best perf).
    weight: (num_classes, C) — PyTorch Linear layout.  bias: (num_classes,).
    """
    B, C, H, W = x_nchw.shape
    assert H == W, "avg_pool2d(kernel_size=x.shape[2]) assumes square spatial dims"
    HW = H * W
    num_classes = weight.shape[0]

    # NCHW consumed directly: (B, C, H, W) -> (B, C, H*W) is a free reshape (no HBM round trip).
    x_flat = x_nchw.reshape(B, C, HW)

    # Class dim padded to a lane multiple (unmasked output stores, aligned MXU N); 1/HW folded in.
    n_pad = _round_up(num_classes, 128)
    w_t = (
        jnp.zeros((C, n_pad), jnp.float32)
        .at[:, :num_classes]
        .set(weight.T.astype(jnp.float32) * (1.0 / HW))
    )
    b2 = (
        jnp.full((1, n_pad), -1e30, jnp.float32)
        .at[0, :num_classes]
        .set(bias.astype(jnp.float32))
    )

    # Batch-tile sizing against the real VMEM footprint:
    #   resident : double-buffered weight + bias (BlockSpec allocates 2 buffers even with a
    #              constant index_map; single-buffering them via pl.Buffered(1) would free
    #              this, but we conservatively budget for 2x instead of relying on it),
    #   per row  : double-buffered x tile + double-buffered output tile.
    vmem_limit = _vmem_limit_bytes()
    x_itemsize = jnp.dtype(x_flat.dtype).itemsize
    resident = 2 * (C * n_pad + n_pad) * 4
    per_row = 2 * C * HW * x_itemsize + 2 * n_pad * 4
    slack = 4 * 1024 * 1024
    avail = vmem_limit - slack - resident
    if avail < 8 * per_row:
        # TODO(synk): very wide heads (huge C*Npad) need a class-tiled grid axis so the weight
        #             is not fully VMEM-resident; not required for this module's shapes.
        tb = 8
    else:
        tb = min(1024, avail // per_row)
        tb = max(8, (tb // 8) * 8)

    if tb >= B:
        tb = B                                   # whole batch fits in one tile
        if B >= 16:
            # Force >=2 batch tiles so both of v7x's TensorCores get work on the "parallel"
            # axis; costs only one extra ~0.35us grid step on single-TC chips (v5e/v6e).
            tb = max(8, ((-(-B // 2)) // 8) * 8)

    b_padded = _round_up(B, tb)
    if b_padded != B:
        x_flat = jnp.pad(x_flat, ((0, b_padded - B), (0, 0), (0, 0)))

    grid = (b_padded // tb,)

    out = pl.pallas_call(
        head_kernel,
        out_shape=jax.ShapeDtypeStruct((b_padded, n_pad), jnp.float32),
        grid_spec=pltpu.PrefetchScalarGridSpec(
            num_scalar_prefetch=0,
            grid=grid,
            in_specs=[
                pl.BlockSpec((tb, C, HW), lambda b: (b, 0, 0)),   # streamed batch tiles (native dtype)
                pl.BlockSpec((C, n_pad), lambda b: (0, 0)),       # VMEM-resident weights (1/HW folded)
                pl.BlockSpec((1, n_pad), lambda b: (0, 0)),       # VMEM-resident bias (+padding mask)
            ],
            out_specs=pl.BlockSpec((tb, n_pad), lambda b: (b, 0)),
        ),
        compiler_params=pltpu.CompilerParams(
            dimension_semantics=("parallel",),   # shard batch tiles across TCs on v7x
            vmem_limit_bytes=vmem_limit,
        ),
    )(x_flat, w_t, b2)

    # Drop batch padding and the padded class columns (their probabilities are exactly 0).
    return out[:B, :num_classes]


if __name__ == "__main__":
    # Small synthetic shapes consistent with the module's head:
    #   backbone output feature map (B, out_channels, H, W); Linear(out_channels, num_classes).
    B, out_channels, H, W = 16, 32, 16, 16
    num_classes = 16

    key = jax.random.PRNGKey(0)
    kx, kw, kb = jax.random.split(key, 3)
    # Stream the feature map in bf16 (halves the dominant HBM traffic); accumulation is f32.
    x = jax.random.normal(kx, (B, out_channels, H, W), jnp.float32).astype(jnp.bfloat16)
    # Deterministic Linear init (PyTorch-style uniform bound 1/sqrt(fan_in)).
    bound = 1.0 / (out_channels ** 0.5)
    weight = jax.random.uniform(kw, (num_classes, out_channels), jnp.float32, -bound, bound)
    bias = jax.random.uniform(kb, (num_classes,), jnp.float32, -bound, bound)

    out = inception_resnet_head(x, weight, bias)
    out = jax.block_until_ready(out)

    # Pure-JAX reference of the same head on the same (bf16) feature-map values.
    x32 = x.astype(jnp.float32)
    pooled_ref = jnp.mean(x32.reshape(B, out_channels, H * W), axis=-1)
    logits_ref = pooled_ref @ weight.T + bias
    ref = jax.nn.softmax(logits_ref, axis=1)

    assert out.shape == (B, num_classes)
    assert jnp.allclose(out, ref, atol=2e-3, rtol=2e-3)
    # Exact divide -> rows sum to 1 within f32 rounding.
    assert jnp.allclose(jnp.sum(out, axis=1), 1.0, atol=1e-4)

    print("KERNEL_OK")
</pallas_src>

<mosaic_0001>
module attributes {stable_mosaic.version = 11 : i64} {
  func.func @head_kernel(%arg0: i32, %arg1: memref<8x32x256xbf16, #tpu.memory_space<vmem>>, %arg2: memref<32x128xf32, #tpu.memory_space<vmem>>, %arg3: memref<1x128xf32, #tpu.memory_space<vmem>>, %arg4: memref<8x128xf32, #tpu.memory_space<vmem>>) attributes {dimension_semantics = [#tpu.dimension_semantics<parallel>], iteration_bounds = array<i64: 2>, scalar_prefetch = 0 : i64, scratch_operands = 0 : i64, tpu.core_type = #tpu.core_type<tc>, window_params = [{transform_indices = @transform_0, window_bounds = array<i64: 8, 32, 256>}, {pipeline_mode = #tpu.pipeline_mode<synchronous>, transform_indices = @transform_1, window_bounds = array<i64: 32, 128>}, {pipeline_mode = #tpu.pipeline_mode<synchronous>, transform_indices = @transform_2, window_bounds = array<i64: 1, 128>}, {transform_indices = @transform_3, window_bounds = array<i64: 8, 128>}]} {
    %c0 = arith.constant 0 : index
    %c0_0 = arith.constant 0 : index
    %c0_1 = arith.constant 0 : index
    %0 = vector.load %arg1[%c0, %c0_0, %c0_1] : memref<8x32x256xbf16, #tpu.memory_space<vmem>>, vector<8x32x256xbf16>
    %1 = arith.extf %0 : vector<8x32x256xbf16> to vector<8x32x256xf32>
    %cst = arith.constant dense<0.000000e+00> : vector<8x32xf32>
    %2 = vector.multi_reduction <add>, %1, %cst [2] : vector<8x32x256xf32> to vector<8x32xf32>
    %c0_2 = arith.constant 0 : index
    %c0_3 = arith.constant 0 : index
    %3 = vector.load %arg2[%c0_2, %c0_3] : memref<32x128xf32, #tpu.memory_space<vmem>>, vector<32x128xf32>
    %cst_4 = arith.constant dense<0.000000e+00> : vector<8x128xf32>
    %4 = tpu.matmul %2, %3, %cst_4 {dimension_numbers = #tpu.dot_dimension_numbers<[1], [0], [0], [1], [0, 0, 1, 1], [], []>} : vector<8x32xf32>, vector<32x128xf32>, vector<8x128xf32> -> vector<8x128xf32>
    %c0_5 = arith.constant 0 : index
    %c0_6 = arith.constant 0 : index
    %5 = vector.load %arg3[%c0_5, %c0_6] : memref<1x128xf32, #tpu.memory_space<vmem>>, vector<1x128xf32>
    %6 = vector.broadcast %5 : vector<1x128xf32> to vector<8x128xf32>
    %7 = arith.addf %4, %6 : vector<8x128xf32>
    %cst_7 = arith.constant dense<0xFF800000> : vector<8xf32>
    %8 = vector.multi_reduction <maximumf>, %7, %cst_7 [1] : vector<8x128xf32> to vector<8xf32>
    %9 = vector.shape_cast %8 : vector<8xf32> to vector<8x1xf32>
    %10 = vector.broadcast %9 : vector<8x1xf32> to vector<8x128xf32>
    %11 = arith.subf %7, %10 : vector<8x128xf32>
    %12 = math.exp %11 : vector<8x128xf32>
    %cst_8 = arith.constant dense<0.000000e+00> : vector<8xf32>
    %13 = vector.multi_reduction <add>, %12, %cst_8 [1] : vector<8x128xf32> to vector<8xf32>
    %14 = vector.shape_cast %13 : vector<8xf32> to vector<8x1xf32>
    %15 = vector.broadcast %14 : vector<8x1xf32> to vector<8x128xf32>
    %16 = arith.divf %12, %15 : vector<8x128xf32>
    %c0_9 = arith.constant 0 : index
    %c0_10 = arith.constant 0 : index
    %17 = vector.load %arg4[%c0_9, %c0_10] : memref<8x128xf32, #tpu.memory_space<vmem>>, vector<8x128xf32>
    tpu.vector_store %arg4[%c0_9, %c0_10], %16 {strides = array<i32>} : memref<8x128xf32, #tpu.memory_space<vmem>>, vector<8x128xf32>,
    return
  }
  func.func @transform_0(%arg0: i32) -> (i32, i32, i32) {
    %c0_i32 = arith.constant 0 : i32
    %c0_i32_0 = arith.constant 0 : i32
    %c0_i32_1 = arith.constant 0 : i32
    return %arg0, %c0_i32, %c0_i32_0 : i32, i32, i32
  }
  func.func @transform_1(%arg0: i32) -> (i32, i32) {
    %c0_i32 = arith.constant 0 : i32
    %c0_i32_0 = arith.constant 0 : i32
    %c0_i32_1 = arith.constant 0 : i32
    return %c0_i32, %c0_i32_0 : i32, i32
  }
  func.func @transform_2(%arg0: i32) -> (i32, i32) {
    %c0_i32 = arith.constant 0 : i32
    %c0_i32_0 = arith.constant 0 : i32
    %c0_i32_1 = arith.constant 0 : i32
    return %c0_i32, %c0_i32_0 : i32, i32
  }
  func.func @transform_3(%arg0: i32) -> (i32, i32) {
    %c0_i32 = arith.constant 0 : i32
    %c0_i32_0 = arith.constant 0 : i32
    return %arg0, %c0_i32 : i32, i32
  }
}

</mosaic_0001>

<llo_original>
// kernel: tpu_custom_call.1
$region0: #{tpu_custom_call.1}
  #allocation0 [shape = 'u32[]', space=smem, size = 0x4, offset = 0x4, fixed_abs, tag = 'smem constant byte address 0x4 - core index']
  #allocation1 [shape = 'u32[144,128]{1,0:T(1,128)}', space=vmem, size = 0x12000, scoped, tag = 'internal scratch']
  %s0 = inlined_call_operand.hbm [shape: bf16[16,32,256], index: 0, kind: input, shape index: {}]
  %s1 = inlined_call_operand.hbm [shape: f32[32,128], index: 1, kind: input, shape index: {}]
  %s2 = inlined_call_operand.vmem [shape: f32[1,128], index: 2, kind: input, shape index: {}]
  %s3 = inlined_call_operand.hbm [shape: f32[16,128], index: 3, kind: output, shape index: {}]
  %s4 = sld [smem:[#allocation0]]
  $region53: #{tpu_custom_call.1} parent=0
    _
  %s6 = ssub.s32 1, %s4
  %s7 = scalar_select 0, %s6, %s4
  $region1: #{tpu_custom_call.1} parent=0
    #allocation2 [shape = 'u8[262144]{0}', space=vmem, size = 0x40000, scoped, tag = 'input window, operand 0']
    #allocation3 [shape = 's32[2]{0}', space=sflag, size = 0x8, scoped, tag = 'scoped memory for tpu_custom_call.1']
    #allocation4 [shape = 's32[2]{0}', space=sflag, size = 0x8, scoped, tag = 'scoped memory for tpu_custom_call.1']
    #allocation5 [shape = 'u8[16384]{0}', space=vmem, size = 0x4000, scoped, tag = 'input window, operand 1, single buffered']
    #allocation6 [shape = 's32[1]{0}', space=sflag, size = 0x4, scoped, tag = 'scoped memory for tpu_custom_call.1']
    #allocation7 [shape = 'u8[8192]{0}', space=vmem, size = 0x2000, scoped, tag = 'output window, operand 0']
    %8 = vsyncpa [#allocation3], 0
    %s9 = scalar_lea.sflag [#allocation3], 1
    %10 = vsyncpa %s9, 0
    %11 = vsyncpa [#allocation6], 0
    %12 = vsyncpa [#allocation4], 0
    %s13 = scalar_lea.sflag [#allocation4], 1
    %14 = vsyncpa %s13, 0
    loop: start=0, step=1, limit=4
    $region2: #{tpu_custom_call.1} parent=1 // loop_pre_header
      _
    $region3: #{tpu_custom_call.1} parent=1 // loop_header
      %s16 = sphi 0, %s20
      %p17 = scmp.ge.s32.totalorder %s16, 4
      %s26 = sphi 0, %s28
      %s29 = sphi 0, %s26
      %s30 = sphi 0, %s29
      %s46 = sphi 0, %s30
      %s50 = sphi 0, %s50
      %s52 = sphi 0, %s50
      %s53 = sphi 0, %s52
      %s67 = sphi 0, %s53
      %s71 = sphi 0, %s71
      %s73 = sphi 0, %s71
      %s74 = sphi 0, %s73
      %s88 = sphi 0, %s74
      %s94 = sphi 0, %s96
      %s97 = sphi 0, %s94
      %s98 = sphi 0, %s97
      %s114 = sphi 0, %s98
    $region4: #{tpu_custom_call.1} parent=1 // loop_header_branch
      %19 = sbr.rel (%p17) target = $region8
    $region5: #{tpu_custom_call.1} parent=1 // loop_body
      %s21 = ssub.s32 %s16, 1
      %s22 = ssub.s32 %s16, 2
      %s23 = sadd.s32 %s16, 1
      %s24 = ssub.s32 %s16, %s23
      %p25 = scmp.eq.s32.totalorder %s24, 0
      %s27 = sadd.s32 %s26, 1
      %s28 = scalar_select %p25, %s26, %s27
      %p31 = pneg %p25
      %p32 = scmp.eq.s32.totalorder %s16, 1
      %p33 = por %p31, %p32
      %p34 = scmp.ne.s32.totalorder %s26, %s29
      %p35 = scmp.eq.s32.totalorder %s16, 0
      %p36 = por %p34, %p35
      %p37 = scmp.ne.s32.totalorder %s26, %s29
      %p38 = scmp.eq.s32.totalorder %s21, 1
      %p39 = por %p37, %p38
      %p40 = scmp.ne.s32.totalorder %s29, %s30
      %p41 = scmp.eq.s32.totalorder %s21, 0
      %p42 = por %p40, %p41
      %p43 = scmp.ne.s32.totalorder %s29, %s30
      %p44 = scmp.eq.s32.totalorder %s22, 1
      %p45 = por %p43, %p44
      %p47 = scmp.ne.s32.totalorder %s30, %s46
      %p48 = scmp.eq.s32.totalorder %s22, 0
      %p49 = por %p47, %p48
      %s51 = sadd.s32 %s50, 1
      %p54 = scmp.eq.s32.totalorder %s16, 1
      %p55 = scmp.ne.s32.totalorder %s50, %s52
      %p56 = scmp.eq.s32.totalorder %s16, 0
      %p57 = por %p55, %p56
      %p58 = scmp.ne.s32.totalorder %s50, %s52
      %p59 = scmp.eq.s32.totalorder %s21, 1
      %p60 = por %p58, %p59
      %p61 = scmp.ne.s32.totalorder %s52, %s53
      %p62 = scmp.eq.s32.totalorder %s21, 0
      %p63 = por %p61, %p62
      %p64 = scmp.ne.s32.totalorder %s52, %s53
      %p65 = scmp.eq.s32.totalorder %s22, 1
      %p66 = por %p64, %p65
      %p68 = scmp.ne.s32.totalorder %s53, %s67
      %p69 = scmp.eq.s32.totalorder %s22, 0
      %p70 = por %p68, %p69
      %s72 = sadd.s32 %s71, 1
      %p75 = scmp.eq.s32.totalorder %s16, 1
      %p76 = scmp.ne.s32.totalorder %s71, %s73
      %p77 = scmp.eq.s32.totalorder %s16, 0
      %p78 = por %p76, %p77
      %p79 = scmp.ne.s32.totalorder %s71, %s73
      %p80 = scmp.eq.s32.totalorder %s21, 1
      %p81 = por %p79, %p80
      %p82 = scmp.ne.s32.totalorder %s73, %s74
      %p83 = scmp.eq.s32.totalorder %s21, 0
      %p84 = por %p82, %p83
      %p85 = scmp.ne.s32.totalorder %s73, %s74
      %p86 = scmp.eq.s32.totalorder %s22, 1
      %p87 = por %p85, %p86
      %p89 = scmp.ne.s32.totalorder %s74, %s88
      %p90 = scmp.eq.s32.totalorder %s22, 0
      %p91 = por %p89, %p90
      %s92 = ssub.s32 %s16, %s23
      %p93 = scmp.eq.s32.totalorder %s92, 0
      %s95 = sadd.s32 %s94, 1
      %s96 = scalar_select %p93, %s94, %s95
      %p99 = pneg %p93
      %p100 = scmp.eq.s32.totalorder %s16, 1
      %p101 = por %p99, %p100
      %p102 = scmp.ne.s32.totalorder %s94, %s97
      %p103 = scmp.eq.s32.totalorder %s16, 0
      %p104 = por %p102, %p103
      %p105 = scmp.ne.s32.totalorder %s94, %s97
      %p106 = scmp.eq.s32.totalorder %s21, 1
      %p107 = por %p105, %p106
      %p108 = scmp.ne.s32.totalorder %s97, %s98
      %p109 = scmp.eq.s32.totalorder %s21, 0
      %p110 = por %p108, %p109
      %p111 = scmp.ne.s32.totalorder %s97, %s98
      %p112 = scmp.eq.s32.totalorder %s22, 1
      %p113 = por %p111, %p112
      %p115 = scmp.ne.s32.totalorder %s98, %s114
      %p116 = scmp.eq.s32.totalorder %s22, 0
      %p117 = por %p115, %p116
      %p118 = scmp.le.s32.totalorder 1, %s16
      %p119 = scmp.lt.s32.totalorder %s16, 3
      %p120 = pnand %p118, %p119
      %p121 = pneg %p120
      // Predicated region
      $region9: #{tpu_custom_call.1} parent=5 // pred_check
        _
      $region10: #{tpu_custom_call.1} parent=5 // pred_check_branch
        %123 = sbr.rel (%p120) target = $region12
      $region11: #{tpu_custom_call.1} parent=5 // pred_region
        %s124 = ssub.s32 %s16, 1
        // Predicated region
        $region13: #{tpu_custom_call.1} parent=11 // pred_check
          %p125 = pneg %p63
        $region14: #{tpu_custom_call.1} parent=11 // pred_check_branch
          %127 = sbr.rel (%p125) target = $region16
        $region15: #{tpu_custom_call.1} parent=11 // pred_region
          %s129 = ssub.s32 512, 512
          %130 = vsyncadd [#allocation6], %s129
          %s131 = sshll.u32 [#allocation5], 4
          %s132 = int_to_ptr.vmem [resolvable:$true] %s131
          %137 = dma.hbm_to_vmem [thread:$0]  %s1, 512, %s132, [#allocation6], 128, 128, 8
        $region16: #{tpu_custom_call.1} parent=11 // pred_fallthru
          _
        // Predicated region
        $region17: #{tpu_custom_call.1} parent=11 // pred_check
          %p138 = pneg %p84
        $region18: #{tpu_custom_call.1} parent=11 // pred_check_branch
          %140 = sbr.rel (%p138) target = $region20
        $region19: #{tpu_custom_call.1} parent=11 // pred_region
          _
        $region20: #{tpu_custom_call.1} parent=11 // pred_fallthru
          _
      $region12: #{tpu_custom_call.1} parent=5 // pred_fallthru
        _
      %p141 = scmp.lt.s32.totalorder %s16, 2
      // Predicated region
      $region21: #{tpu_custom_call.1} parent=5 // pred_check
        %p142 = pneg %p141
      $region22: #{tpu_custom_call.1} parent=5 // pred_check_branch
        %144 = sbr.rel (%p142) target = $region24
      $region23: #{tpu_custom_call.1} parent=5 // pred_region
        // Predicated region
        $region25: #{tpu_custom_call.1} parent=23 // pred_check
          %p145 = pneg %p36
        $region26: #{tpu_custom_call.1} parent=23 // pred_check_branch
          %147 = sbr.rel (%p145) target = $region28
        $region27: #{tpu_custom_call.1} parent=23 // pred_region
          %s148 = sand.u32 %s26, 1
          %s149 = scalar_lea.sflag [#allocation3], %s148
          %s150 = sand.u32 %s26, 1
          %s151 = smul.addr %s150, 256
          %s152 = scalar_lea.vmem [#allocation2], %s151
          %s153 = smul.u32 8, %s16
          %s155 = ssub.s32 4096, 4096
          %156 = vsyncadd %s149, %s155
          %s157 = smul.addr %s153, 8
          %s158 = smul.addr %s157, 64
          %s159 = scalar_lea.hbm %s0, %s158
          %s160 = sshll.u32 %s152, 4
          %s161 = int_to_ptr.vmem [resolvable:$true] %s160
          %166 = dma.hbm_to_vmem [thread:$0]  %s159, 4096, %s161, %s149, 128, 128, 8
        $region28: #{tpu_custom_call.1} parent=23 // pred_fallthru
          _
      $region24: #{tpu_custom_call.1} parent=5 // pred_fallthru
        _
      %p167 = scmp.le.s32.totalorder 1, %s16
      %p168 = scmp.lt.s32.totalorder %s16, 3
      %p169 = pnand %p167, %p168
      %p170 = pneg %p169
      // Predicated region
      $region29: #{tpu_custom_call.1} parent=5 // pred_check
        _
      $region30: #{tpu_custom_call.1} parent=5 // pred_check_branch
        %172 = sbr.rel (%p169) target = $region32
      $region31: #{tpu_custom_call.1} parent=5 // pred_region
        %s173 = ssub.s32 %s16, 1
        %s174 = sand.u32 %s29, 1
        %s175 = scalar_lea.sflag [#allocation3], %s174
        %s176 = sand.u32 %s29, 1
        %s177 = smul.addr %s176, 256
        %s178 = scalar_lea.vmem [#allocation2], %s177
        // Predicated region
        $region33: #{tpu_custom_call.1} parent=31 // pred_check
          %p179 = pneg %p42
        $region34: #{tpu_custom_call.1} parent=31 // pred_check_branch
          %181 = sbr.rel (%p179) target = $region36
        $region35: #{tpu_custom_call.1} parent=31 // pred_region
          %182 = dma.done %s175, 4096
        $region36: #{tpu_custom_call.1} parent=31 // pred_fallthru
          _
        // Predicated region
        $region37: #{tpu_custom_call.1} parent=31 // pred_check
          %p183 = pneg %p63
        $region38: #{tpu_custom_call.1} parent=31 // pred_check_branch
          %185 = sbr.rel (%p183) target = $region40
        $region39: #{tpu_custom_call.1} parent=31 // pred_region
          %186 = dma.done [#allocation6], 512
        $region40: #{tpu_custom_call.1} parent=31 // pred_fallthru
          _
        %s187 = sand.u32 %s29, 1
        %s188 = scalar_lea.sflag [#allocation3], %s187
        %s189 = sand.u32 %s29, 1
        %s190 = smul.addr %s189, 256
        %s191 = scalar_lea.vmem [#allocation2], %s190
        %p192 = pneg %p42
        %p193 = pneg %p39
        %p194 = pneg %p63
        %p195 = pneg %p60
        %p196 = pneg %p84
        %p197 = pneg %p81
        %p198 = pneg %p110
        %p199 = pneg %p107
        %s200 = sand.u32 %s97, 1
        %s201 = scalar_lea.sflag [#allocation4], %s200
        %s202 = sand.u32 %s97, 1
        %s203 = smul.addr %s202, 8
        %s204 = scalar_lea.vmem [#allocation7], %s203
        %s205 = smul.u32 8, %s21
        %v206 = vld [vmem:[%s178] sm:$0xff]
        %v207 = vld [vmem:[%s178 + $0x8] sm:$0xff]
        %v208 = vld [vmem:[%s178 + $0x10] sm:$0xff]
        %v209 = vld [vmem:[%s178 + $0x18] sm:$0xff]
        %v210 = vld [vmem:[%s178 + $0x20] sm:$0xff]
        %v211 = vld [vmem:[%s178 + $0x28] sm:$0xff]
        %v212 = vld [vmem:[%s178 + $0x30] sm:$0xff]
        %v213 = vld [vmem:[%s178 + $0x38] sm:$0xff]
        %v214 = vld [vmem:[%s178 + $0x40] sm:$0xff]
        %v215 = vld [vmem:[%s178 + $0x48] sm:$0xff]
        %v216 = vld [vmem:[%s178 + $0x50] sm:$0xff]
        %v217 = vld [vmem:[%s178 + $0x58] sm:$0xff]
        %v218 = vld [vmem:[%s178 + $0x60] sm:$0xff]
        %v219 = vld [vmem:[%s178 + $0x68] sm:$0xff]
        %v220 = vld [vmem:[%s178 + $0x70] sm:$0xff]
        %v221 = vld [vmem:[%s178 + $0x78] sm:$0xff]
        %v222 = vld [vmem:[%s178 + $0x80] sm:$0xff]
        %v223 = vld [vmem:[%s178 + $0x88] sm:$0xff]
        %v224 = vld [vmem:[%s178 + $0x90] sm:$0xff]
        %v225 = vld [vmem:[%s178 + $0x98] sm:$0xff]
        %v226 = vld [vmem:[%s178 + $0xa0] sm:$0xff]
        %v227 = vld [vmem:[%s178 + $0xa8] sm:$0xff]
        %v228 = vld [vmem:[%s178 + $0xb0] sm:$0xff]
        %v229 = vld [vmem:[%s178 + $0xb8] sm:$0xff]
        %v230 = vld [vmem:[%s178 + $0xc0] sm:$0xff]
        %v231 = vld [vmem:[%s178 + $0xc8] sm:$0xff]
        %v232 = vld [vmem:[%s178 + $0xd0] sm:$0xff]
        %v233 = vld [vmem:[%s178 + $0xd8] sm:$0xff]
        %v234 = vld [vmem:[%s178 + $0xe0] sm:$0xff]
        %v235 = vld [vmem:[%s178 + $0xe8] sm:$0xff]
        %v236 = vld [vmem:[%s178 + $0xf0] sm:$0xff]
        %v237 = vld [vmem:[%s178 + $0xf8] sm:$0xff]
        %v238 = vunpack.c.l.bf16 %v206
        %v239 = vunpack.c.h.bf16 %v206
        %v240 = vunpack.c.l.bf16 %v207
        %v241 = vunpack.c.h.bf16 %v207
        %v242 = vunpack.c.l.bf16 %v208
        %v243 = vunpack.c.h.bf16 %v208
        %v244 = vunpack.c.l.bf16 %v209
        %v245 = vunpack.c.h.bf16 %v209
        %v246 = vunpack.c.l.bf16 %v210
        %v247 = vunpack.c.h.bf16 %v210
        %v248 = vunpack.c.l.bf16 %v211
        %v249 = vunpack.c.h.bf16 %v211
        %v250 = vunpack.c.l.bf16 %v212
        %v251 = vunpack.c.h.bf16 %v212
        %v252 = vunpack.c.l.bf16 %v213
        %v253 = vunpack.c.h.bf16 %v213
        %v254 = vunpack.c.l.bf16 %v214
        %v255 = vunpack.c.h.bf16 %v214
        %v256 = vunpack.c.l.bf16 %v215
        %v257 = vunpack.c.h.bf16 %v215
        %v258 = vunpack.c.l.bf16 %v216
        %v259 = vunpack.c.h.bf16 %v216
        %v260 = vunpack.c.l.bf16 %v217
        %v261 = vunpack.c.h.bf16 %v217
        %v262 = vunpack.c.l.bf16 %v218
        %v263 = vunpack.c.h.bf16 %v218
        %v264 = vunpack.c.l.bf16 %v219
        %v265 = vunpack.c.h.bf16 %v219
        %v266 = vunpack.c.l.bf16 %v220
        %v267 = vunpack.c.h.bf16 %v220
        %v268 = vunpack.c.l.bf16 %v221
        %v269 = vunpack.c.h.bf16 %v221
        %v270 = vunpack.c.l.bf16 %v222
        %v271 = vunpack.c.h.bf16 %v222
        %v272 = vunpack.c.l.bf16 %v223
        %v273 = vunpack.c.h.bf16 %v223
        %v274 = vunpack.c.l.bf16 %v224
        %v275 = vunpack.c.h.bf16 %v224
        %v276 = vunpack.c.l.bf16 %v225
        %v277 = vunpack.c.h.bf16 %v225
        %v278 = vunpack.c.l.bf16 %v226
        %v279 = vunpack.c.h.bf16 %v226
        %v280 = vunpack.c.l.bf16 %v227
        %v281 = vunpack.c.h.bf16 %v227
        %v282 = vunpack.c.l.bf16 %v228
        %v283 = vunpack.c.h.bf16 %v228
        %v284 = vunpack.c.l.bf16 %v229
        %v285 = vunpack.c.h.bf16 %v229
        %v286 = vunpack.c.l.bf16 %v230
        %v287 = vunpack.c.h.bf16 %v230
        %v288 = vunpack.c.l.bf16 %v231
        %v289 = vunpack.c.h.bf16 %v231
        %v290 = vunpack.c.l.bf16 %v232
        %v291 = vunpack.c.h.bf16 %v232
        %v292 = vunpack.c.l.bf16 %v233
        %v293 = vunpack.c.h.bf16 %v233
        %v294 = vunpack.c.l.bf16 %v234
        %v295 = vunpack.c.h.bf16 %v234
        %v296 = vunpack.c.l.bf16 %v235
        %v297 = vunpack.c.h.bf16 %v235
        %v298 = vunpack.c.l.bf16 %v236
        %v299 = vunpack.c.h.bf16 %v236
        %v300 = vunpack.c.l.bf16 %v237
        %v301 = vunpack.c.h.bf16 %v237
        %v302 = vadd.f32 %v238, %v239
        %303 = vadd.xlane.f32.xlu0 %v302
        %v304 = vpop.xlane.xlu0 %303
        %v305 = vadd.f32 %v240, %v241
        %306 = vadd.xlane.f32.xlu0 %v305
        %v307 = vpop.xlane.xlu0 %306
        %v308 = vadd.f32 %v242, %v243
        %309 = vadd.xlane.f32.xlu0 %v308
        %v310 = vpop.xlane.xlu0 %309
        %v311 = vadd.f32 %v244, %v245
        %312 = vadd.xlane.f32.xlu0 %v311
        %v313 = vpop.xlane.xlu0 %312
        %v314 = vadd.f32 %v246, %v247
        %315 = vadd.xlane.f32.xlu0 %v314
        %v316 = vpop.xlane.xlu0 %315
        %v317 = vadd.f32 %v248, %v249
        %318 = vadd.xlane.f32.xlu0 %v317
        %v319 = vpop.xlane.xlu0 %318
        %v320 = vadd.f32 %v250, %v251
        %321 = vadd.xlane.f32.xlu0 %v320
        %v322 = vpop.xlane.xlu0 %321
        %v323 = vadd.f32 %v252, %v253
        %324 = vadd.xlane.f32.xlu0 %v323
        %v325 = vpop.xlane.xlu0 %324
        %v326 = vadd.f32 %v254, %v255
        %327 = vadd.xlane.f32.xlu0 %v326
        %v328 = vpop.xlane.xlu0 %327
        %v329 = vadd.f32 %v256, %v257
        %330 = vadd.xlane.f32.xlu0 %v329
        %v331 = vpop.xlane.xlu0 %330
        %v332 = vadd.f32 %v258, %v259
        %333 = vadd.xlane.f32.xlu0 %v332
        %v334 = vpop.xlane.xlu0 %333
        %v335 = vadd.f32 %v260, %v261
        %336 = vadd.xlane.f32.xlu0 %v335
        %v337 = vpop.xlane.xlu0 %336
        %v338 = vadd.f32 %v262, %v263
        %339 = vadd.xlane.f32.xlu0 %v338
        %v340 = vpop.xlane.xlu0 %339
        %v341 = vadd.f32 %v264, %v265
        %342 = vadd.xlane.f32.xlu0 %v341
        %v343 = vpop.xlane.xlu0 %342
        %v344 = vadd.f32 %v266, %v267
        %345 = vadd.xlane.f32.xlu0 %v344
        %v346 = vpop.xlane.xlu0 %345
        %v347 = vadd.f32 %v268, %v269
        %348 = vadd.xlane.f32.xlu0 %v347
        %v349 = vpop.xlane.xlu0 %348
        %v350 = vadd.f32 %v270, %v271
        %351 = vadd.xlane.f32.xlu0 %v350
        %v352 = vpop.xlane.xlu0 %351
        %v353 = vadd.f32 %v272, %v273
        %354 = vadd.xlane.f32.xlu0 %v353
        %v355 = vpop.xlane.xlu0 %354
        %v356 = vadd.f32 %v274, %v275
        %357 = vadd.xlane.f32.xlu0 %v356
        %v358 = vpop.xlane.xlu0 %357
        %v359 = vadd.f32 %v276, %v277
        %360 = vadd.xlane.f32.xlu0 %v359
        %v361 = vpop.xlane.xlu0 %360
        %v362 = vadd.f32 %v278, %v279
        %363 = vadd.xlane.f32.xlu0 %v362
        %v364 = vpop.xlane.xlu0 %363
        %v365 = vadd.f32 %v280, %v281
        %366 = vadd.xlane.f32.xlu0 %v365
        %v367 = vpop.xlane.xlu0 %366
        %v368 = vadd.f32 %v282, %v283
        %369 = vadd.xlane.f32.xlu0 %v368
        %v370 = vpop.xlane.xlu0 %369
        %v371 = vadd.f32 %v284, %v285
        %372 = vadd.xlane.f32.xlu0 %v371
        %v373 = vpop.xlane.xlu0 %372
        %v374 = vadd.f32 %v286, %v287
        %375 = vadd.xlane.f32.xlu0 %v374
        %v376 = vpop.xlane.xlu0 %375
        %v377 = vadd.f32 %v288, %v289
        %378 = vadd.xlane.f32.xlu0 %v377
        %v379 = vpop.xlane.xlu0 %378
        %v380 = vadd.f32 %v290, %v291
        %381 = vadd.xlane.f32.xlu0 %v380
        %v382 = vpop.xlane.xlu0 %381
        %v383 = vadd.f32 %v292, %v293
        %384 = vadd.xlane.f32.xlu0 %v383
        %v385 = vpop.xlane.xlu0 %384
        %v386 = vadd.f32 %v294, %v295
        %387 = vadd.xlane.f32.xlu0 %v386
        %v388 = vpop.xlane.xlu0 %387
        %v389 = vadd.f32 %v296, %v297
        %390 = vadd.xlane.f32.xlu0 %v389
        %v391 = vpop.xlane.xlu0 %390
        %v392 = vadd.f32 %v298, %v299
        %393 = vadd.xlane.f32.xlu0 %v392
        %v394 = vpop.xlane.xlu0 %393
        %v395 = vadd.f32 %v300, %v301
        %396 = vadd.xlane.f32.xlu0 %v395
        %v397 = vpop.xlane.xlu0 %396
        %v398 = vld [vmem:[#allocation5] sm:$0xff]
        %v399 = vld [vmem:[#allocation5 + $0x8] sm:$0xff]
        %v400 = vld [vmem:[#allocation5 + $0x10] sm:$0xff]
        %v401 = vld [vmem:[#allocation5 + $0x18] sm:$0xff]
        %v402 = vld [vmem:[%s2] sm:$0x1]
        %v404 = vlaneseq
        %v405 = vshrl.u32 %v404, 7
        %v406 = vsub.s32 0, %v405
        %v407 = vrot.slane %v402, %v406
        %v441 = vlaneseq
        %v442 = vand.u32 %v441, 127
        %v443 = vlaneseq
        %v444 = vshrl.u32 %v443, 7
        %v445 = vsub.s32 %v442, %v444
        %v446 = vrot.slane %v304, %v445
        %v447 = vadd.s32 %v442, 4294967288
        %v448 = vlaneseq
        %v449 = vshrl.u32 %v448, 7
        %v450 = vsub.s32 %v447, %v449
        %v451 = vrot.slane %v307, %v450
        %vm452 = vcmask 130112
        %v453 = vsel %vm452, %v451, %v446
        %v454 = vadd.s32 %v442, 4294967280
        %v455 = vlaneseq
        %v456 = vshrl.u32 %v455, 7
        %v457 = vsub.s32 %v454, %v456
        %v458 = vrot.slane %v310, %v457
        %vm459 = vcmask 195712
        %v460 = vsel %vm459, %v458, %v453
        %v461 = vadd.s32 %v442, 4294967272
        %v462 = vlaneseq
        %v463 = vshrl.u32 %v462, 7
        %v464 = vsub.s32 %v461, %v463
        %v465 = vrot.slane %v313, %v464
        %vm466 = vcmask 261312
        %v467 = vsel %vm466, %v465, %v460
        %v468 = vlaneseq
        %v469 = vshrl.u32 %v468, 7
        %v470 = vsub.s32 %v442, %v469
        %v471 = vrot.slane %v316, %v470
        %v472 = vlaneseq
        %v473 = vshrl.u32 %v472, 7
        %v474 = vsub.s32 %v447, %v473
        %v475 = vrot.slane %v319, %v474
        %v476 = vsel %vm452, %v475, %v471
        %v477 = vlaneseq
        %v478 = vshrl.u32 %v477, 7
        %v479 = vsub.s32 %v454, %v478
        %v480 = vrot.slane %v322, %v479
        %v481 = vsel %vm459, %v480, %v476
        %v482 = vlaneseq
        %v483 = vshrl.u32 %v482, 7
        %v484 = vsub.s32 %v461, %v483
        %v485 = vrot.slane %v325, %v484
        %v486 = vsel %vm466, %v485, %v481
        %v487 = vlaneseq
        %v488 = vshrl.u32 %v487, 7
        %v489 = vsub.s32 %v442, %v488
        %v490 = vrot.slane %v328, %v489
        %v491 = vlaneseq
        %v492 = vshrl.u32 %v491, 7
        %v493 = vsub.s32 %v447, %v492
        %v494 = vrot.slane %v331, %v493
        %v495 = vsel %vm452, %v494, %v490
        %v496 = vlaneseq
        %v497 = vshrl.u32 %v496, 7
        %v498 = vsub.s32 %v454, %v497
        %v499 = vrot.slane %v334, %v498
        %v500 = vsel %vm459, %v499, %v495
        %v501 = vlaneseq
        %v502 = vshrl.u32 %v501, 7
        %v503 = vsub.s32 %v461, %v502
        %v504 = vrot.slane %v337, %v503
        %v505 = vsel %vm466, %v504, %v500
        %v506 = vlaneseq
        %v507 = vshrl.u32 %v506, 7
        %v508 = vsub.s32 %v442, %v507
        %v509 = vrot.slane %v340, %v508
        %v510 = vlaneseq
        %v511 = vshrl.u32 %v510, 7
        %v512 = vsub.s32 %v447, %v511
        %v513 = vrot.slane %v343, %v512
        %v514 = vsel %vm452, %v513, %v509
        %v515 = vlaneseq
        %v516 = vshrl.u32 %v515, 7
        %v517 = vsub.s32 %v454, %v516
        %v518 = vrot.slane %v346, %v517
        %v519 = vsel %vm459, %v518, %v514
        %v520 = vlaneseq
        %v521 = vshrl.u32 %v520, 7
        %v522 = vsub.s32 %v461, %v521
        %v523 = vrot.slane %v349, %v522
        %v524 = vsel %vm466, %v523, %v519
        %v525 = vlaneseq
        %v526 = vshrl.u32 %v525, 7
        %v527 = vsub.s32 %v442, %v526
        %v528 = vrot.slane %v352, %v527
        %v529 = vlaneseq
        %v530 = vshrl.u32 %v529, 7
        %v531 = vsub.s32 %v447, %v530
        %v532 = vrot.slane %v355, %v531
        %v533 = vsel %vm452, %v532, %v528
        %v534 = vlaneseq
        %v535 = vshrl.u32 %v534, 7
        %v536 = vsub.s32 %v454, %v535
        %v537 = vrot.slane %v358, %v536
        %v538 = vsel %vm459, %v537, %v533
        %v539 = vlaneseq
        %v540 = vshrl.u32 %v539, 7
        %v541 = vsub.s32 %v461, %v540
        %v542 = vrot.slane %v361, %v541
        %v543 = vsel %vm466, %v542, %v538
        %v544 = vlaneseq
        %v545 = vshrl.u32 %v544, 7
        %v546 = vsub.s32 %v442, %v545
        %v547 = vrot.slane %v364, %v546
        %v548 = vlaneseq
        %v549 = vshrl.u32 %v548, 7
        %v550 = vsub.s32 %v447, %v549
        %v551 = vrot.slane %v367, %v550
        %v552 = vsel %vm452, %v551, %v547
        %v553 = vlaneseq
        %v554 = vshrl.u32 %v553, 7
        %v555 = vsub.s32 %v454, %v554
        %v556 = vrot.slane %v370, %v555
        %v557 = vsel %vm459, %v556, %v552
        %v558 = vlaneseq
        %v559 = vshrl.u32 %v558, 7
        %v560 = vsub.s32 %v461, %v559
        %v561 = vrot.slane %v373, %v560
        %v562 = vsel %vm466, %v561, %v557
        %v563 = vlaneseq
        %v564 = vshrl.u32 %v563, 7
        %v565 = vsub.s32 %v442, %v564
        %v566 = vrot.slane %v376, %v565
        %v567 = vlaneseq
        %v568 = vshrl.u32 %v567, 7
        %v569 = vsub.s32 %v447, %v568
        %v570 = vrot.slane %v379, %v569
        %v571 = vsel %vm452, %v570, %v566
        %v572 = vlaneseq
        %v573 = vshrl.u32 %v572, 7
        %v574 = vsub.s32 %v454, %v573
        %v575 = vrot.slane %v382, %v574
        %v576 = vsel %vm459, %v575, %v571
        %v577 = vlaneseq
        %v578 = vshrl.u32 %v577, 7
        %v579 = vsub.s32 %v461, %v578
        %v580 = vrot.slane %v385, %v579
        %v581 = vsel %vm466, %v580, %v576
        %v582 = vlaneseq
        %v583 = vshrl.u32 %v582, 7
        %v584 = vsub.s32 %v442, %v583
        %v585 = vrot.slane %v388, %v584
        %v586 = vlaneseq
        %v587 = vshrl.u32 %v586, 7
        %v588 = vsub.s32 %v447, %v587
        %v589 = vrot.slane %v391, %v588
        %v590 = vsel %vm452, %v589, %v585
        %v591 = vlaneseq
        %v592 = vshrl.u32 %v591, 7
        %v593 = vsub.s32 %v454, %v592
        %v594 = vrot.slane %v394, %v593
        %v595 = vsel %vm459, %v594, %v590
        %v596 = vlaneseq
        %v597 = vshrl.u32 %v596, 7
        %v598 = vsub.s32 %v461, %v597
        %v599 = vrot.slane %v397, %v598
        %v600 = vsel %vm466, %v599, %v595
        %vm601 = vcmask 1041409
        %v602 = vsel %vm601, %v486, %v467
        %vm603 = vcmask 1042434
        %v604 = vsel %vm603, %v505, %v602
        %vm605 = vcmask 1043459
        %v606 = vsel %vm605, %v524, %v604
        %vm607 = vcmask 1044484
        %v608 = vsel %vm607, %v543, %v606
        %vm609 = vcmask 1045509
        %v610 = vsel %vm609, %v562, %v608
        %vm611 = vcmask 1046534
        %v612 = vsel %vm611, %v581, %v610
        %vm613 = vcmask 1047559
        %v614 = vsel %vm613, %v600, %v612
        %vm615 = vcmask 261120
        %v616 = vsel %vm615, %v614, 0
        %618 = vmatprep.subr.mxu0 0.0
        %619 = vmatpush1.msra.mxu0 %v398
        %620 = vmatprep.subr.mxu0 0.0
        %621 = vmatpush1.msra.mxu0 %v399
        %622 = vmatprep.subr.mxu0 0.0
        %623 = vmatpush1.msra.mxu0 %v400
        %624 = vmatprep.subr.mxu0 0.0
        %625 = vmatpush1.msra.mxu0 %v401
        %626 = vmatprep.subr.mxu0 0.0
        %627 = vmatpush1.msra.mxu0 0.0
        %628 = vmatprep.subr.mxu0 0.0
        %629 = vmatpush1.msra.mxu0 0.0
        %630 = vmatprep.subr.mxu0 0.0
        %631 = vmatpush1.msra.mxu0 0.0
        %632 = vmatprep.subr.mxu0 0.0
        %633 = vmatpush1.msra.mxu0 0.0
        %634 = vmatprep.subr.mxu0 0.0
        %635 = vmatpush1.msra.mxu0 0.0
        %636 = vmatprep.subr.mxu0 0.0
        %637 = vmatpush1.msra.mxu0 0.0
        %638 = vmatprep.subr.mxu0 0.0
        %639 = vmatpush1.msra.mxu0 0.0
        %640 = vmatprep.subr.mxu0 0.0
        %641 = vmatpush1.msra.mxu0 0.0
        %642 = vmatprep.subr.mxu0 0.0
        %643 = vmatpush1.msra.mxu0 0.0
        %644 = vmatprep.subr.mxu0 0.0
        %645 = vmatpush1.msra.mxu0 0.0
        %646 = vmatprep.subr.mxu0 0.0
        %647 = vmatpush1.msra.mxu0 0.0
        %648 = vmatprep.subr.mxu0 0.0
        %649 = vmatpush1.msra.mxu0 0.0
        %650 = vmatprep.subr.mxu0 0.0
        %651 = vmatpush1.msra.mxu0 0.0
        %652 = vmatprep.subr.mxu0 0.0
        %653 = vmatpush1.msra.mxu0 0.0
        %654 = vmatprep.subr.mxu0 0.0
        %655 = vmatpush1.msra.mxu0 0.0
        %656 = vmatprep.subr.mxu0 0.0
        %657 = vmatpush1.msra.mxu0 0.0
        %658 = vmatprep.subr.mxu0 0.0
        %659 = vmatpush1.msra.mxu0 0.0
        %660 = vmatprep.subr.mxu0 0.0
        %661 = vmatpush1.msra.mxu0 0.0
        %662 = vmatprep.subr.mxu0 0.0
        %663 = vmatpush1.msra.mxu0 0.0
        %664 = vmatprep.subr.mxu0 0.0
        %665 = vmatpush1.msra.mxu0 0.0
        %666 = vmatprep.subr.mxu0 0.0
        %667 = vmatpush1.msra.mxu0 0.0
        %668 = vmatprep.subr.mxu0 0.0
        %669 = vmatpush1.msra.mxu0 0.0
        %670 = vmatprep.subr.mxu0 0.0
        %671 = vmatpush1.msra.mxu0 0.0
        %672 = vmatprep.subr.mxu0 0.0
        %673 = vmatpush1.msra.mxu0 0.0
        %674 = vmatprep.subr.mxu0 0.0
        %675 = vmatpush1.msra.mxu0 0.0
        %676 = vmatprep.subr.mxu0 0.0
        %677 = vmatpush1.msra.mxu0 0.0
        %678 = vmatprep.subr.mxu0 0.0
        %679 = vmatpush1.msra.mxu0 0.0
        %680 = vmatprep.subr.mxu0 0.0
        %681 = vmatpush1.msra.mxu0 0.0
        %682 = vmatprep.mubr.f32.mxu0 0.0
        %683 = vmatmul.mubr.f32.gmra.mrb[0].mxu0 %v616
        %v684 = vpop.f32.mrb[0].mxu0
        %v685 = vadd.f32 %v407, %v684
        %v686 = vpop.f32.mrb[0].mxu0
        %687 = vdwg.mxu0
        %688 = vmax.xlane.f32.xlu0 %v685
        %v689 = vpop.xlane.xlu0 %688
        %v690 = vsub.f32 %v685, %v689
        %v691 = vmul.f32 %v690, 1.442695
        %v692 = vpow.pop %v691
        %693 = vadd.xlane.f32.xlu0 %v692
        %v694 = vpop.xlane.xlu0 %693
        %v695 = vrcp.pop %v694
        %v696 = vmul.f32 %v692, %v695
        %697 = vst [vmem:[%s204] sm:$0xff] %v696
        %s698 = sand.u32 %s97, 1
        %s699 = scalar_lea.sflag [#allocation4], %s698
        %s700 = sand.u32 %s97, 1
        %s701 = smul.addr %s700, 8
        %s702 = scalar_lea.vmem [#allocation7], %s701
        // Predicated region
        $region41: #{tpu_custom_call.1} parent=31 // pred_check
          %p703 = pneg %p107
        $region42: #{tpu_custom_call.1} parent=31 // pred_check_branch
          %705 = sbr.rel (%p703) target = $region44
        $region43: #{tpu_custom_call.1} parent=31 // pred_region
          %s707 = ssub.s32 128, 128
          %708 = vsyncadd %s699, %s707
          %s709 = smul.addr %s21, 128
          %s710 = scalar_lea.hbm %s3, %s709
          %s712 = sshll.u32 %s702, 4
          %s713 = int_to_ptr.vmem [resolvable:$true] %s712
          %715 = dma.vmem_to_hbm [thread:$0]  %s713, 128, %s710, %s699
        $region44: #{tpu_custom_call.1} parent=31 // pred_fallthru
          _
      $region32: #{tpu_custom_call.1} parent=5 // pred_fallthru
        _
      %p716 = scmp.le.s32.totalorder 2, %s16
      // Predicated region
      $region45: #{tpu_custom_call.1} parent=5 // pred_check
        %p717 = pneg %p716
      $region46: #{tpu_custom_call.1} parent=5 // pred_check_branch
        %719 = sbr.rel (%p717) target = $region48
      $region47: #{tpu_custom_call.1} parent=5 // pred_region
        %s720 = ssub.s32 %s16, 2
        // Predicated region
        $region49: #{tpu_custom_call.1} parent=47 // pred_check
          %p721 = pneg %p113
        $region50: #{tpu_custom_call.1} parent=47 // pred_check_branch
          %723 = sbr.rel (%p721) target = $region52
        $region51: #{tpu_custom_call.1} parent=47 // pred_region
          %s724 = sand.u32 %s98, 1
          %s725 = scalar_lea.sflag [#allocation4], %s724
          %s726 = sand.u32 %s98, 1
          %s727 = smul.addr %s726, 8
          %s728 = scalar_lea.vmem [#allocation7], %s727
          %729 = dma.done %s725, 128
        $region52: #{tpu_custom_call.1} parent=47 // pred_fallthru
          _
      $region48: #{tpu_custom_call.1} parent=5 // pred_fallthru
        _
    $region6: #{tpu_custom_call.1} parent=1 // loop_footer
      %s20 = sadd.s32 1, %s16
    $region7: #{tpu_custom_call.1} parent=1 // loop_footer_branch
      %15 = sbr.rel target = $region3
    $region8: #{tpu_custom_call.1} parent=1 // loop_exit
      _
    %730 = vsyncpa [#allocation3], 1
    %s731 = scalar_lea.sflag [#allocation3], 1
    %732 = vsyncpa %s731, 1
    %733 = vsyncpa [#allocation6], 1
    %734 = vsyncpa [#allocation4], 1
    %s735 = scalar_lea.sflag [#allocation4], 1
    %736 = vsyncpa %s735, 1

</llo_original>
